<compile_context>
chip_gen: v7x
topology: tpu7x:2x2x1
jax: 0.10.0
libtpu: 0.0.40
codegen_flags: <defaults>
</compile_context>

<pallas_src>
import jax
import jax.numpy as jnp
from jax.experimental import pallas as pl
from jax.experimental.pallas import tpu as pltpu


def _make_shuffle_kernel(channels: int, groups: int):
    """Builds a kernel that channel-shuffles one (1, C, H*W) batch row."""
    cpg = channels // groups

    def kernel(x_ref, o_ref):
        # x_ref / o_ref: (1, C, H*W) VMEM block for one batch row.
        # out channel c_out <- in channel (c_out % g) * (C // g) + c_out // g
        for c_out in range(channels):
            c_in = (c_out % groups) * cpg + c_out // groups
            o_ref[:, c_out, :] = x_ref[:, c_in, :]

    return kernel


def shuffle_channel(x: jax.Array, groups: int) -> jax.Array:
    """Channel shuffle of an NCHW tensor, equivalent to the PyTorch module."""
    N, C, H, W = x.shape
    assert C % groups == 0, "channels must be divisible by groups"
    HW = H * W

    # Contiguous reshape (free) -> lane-dense last dim inside the kernel.
    x3 = x.reshape(N, C, HW)

    out3 = pl.pallas_call(
        _make_shuffle_kernel(C, groups),
        out_shape=jax.ShapeDtypeStruct((N, C, HW), x.dtype),
        grid=(N,),
        in_specs=[pl.BlockSpec((1, C, HW), lambda n: (n, 0, 0))],
        out_specs=pl.BlockSpec((1, C, HW), lambda n: (n, 0, 0)),
        compiler_params=pltpu.CompilerParams(
            dimension_semantics=("parallel",)),
    )(x3)

    return out3.reshape(N, C, H, W)


def _reference(x, groups):
    N, C, H, W = x.shape
    return (x.reshape(N, groups, C // groups, H, W)
             .transpose(0, 2, 1, 3, 4)
             .reshape(N, C, H, W))


if __name__ == "__main__":
    key = jax.random.PRNGKey(0)
    N, C, H, W = 2, 8, 16, 16
    groups = 2

    x = jax.random.normal(key, (N, C, H, W), jnp.float32)

    out = shuffle_channel(x, groups)
    out = jax.block_until_ready(out)

    ref = _reference(x, groups)
    assert out.shape == (N, C, H, W)
    assert bool(jnp.array_equal(out, ref)), "channel shuffle mismatch vs reference"
    print("KERNEL_OK")
</pallas_src>

<mosaic_0001>
module attributes {stable_mosaic.version = 11 : i64} {
  func.func @kernel(%arg0: i32, %arg1: memref<1x8x256xf32, #tpu.memory_space<vmem>>, %arg2: memref<1x8x256xf32, #tpu.memory_space<vmem>>) attributes {dimension_semantics = [#tpu.dimension_semantics<parallel>], iteration_bounds = array<i64: 2>, scalar_prefetch = 0 : i64, scratch_operands = 0 : i64, tpu.core_type = #tpu.core_type<tc>, window_params = [{transform_indices = @transform_0, window_bounds = array<i64: 1, 8, 256>}, {transform_indices = @transform_1, window_bounds = array<i64: 1, 8, 256>}]} {
    %c0 = arith.constant 0 : index
    %c0_0 = arith.constant 0 : index
    %c0_1 = arith.constant 0 : index
    %0 = vector.load %arg1[%c0, %c0_0, %c0_1] : memref<1x8x256xf32, #tpu.memory_space<vmem>>, vector<1x1x256xf32>
    %1 = vector.shape_cast %0 : vector<1x1x256xf32> to vector<1x256xf32>
    %c0_2 = arith.constant 0 : index
    %c0_3 = arith.constant 0 : index
    %c0_4 = arith.constant 0 : index
    %2 = vector.load %arg2[%c0_2, %c0_3, %c0_4] : memref<1x8x256xf32, #tpu.memory_space<vmem>>, vector<1x1x256xf32>
    %3 = vector.shape_cast %2 : vector<1x1x256xf32> to vector<1x256xf32>
    %4 = vector.shape_cast %1 : vector<1x256xf32> to vector<1x1x256xf32>
    tpu.vector_store %arg2[%c0_2, %c0_3, %c0_4], %4 {strides = array<i32>} : memref<1x8x256xf32, #tpu.memory_space<vmem>>, vector<1x1x256xf32>,
    %c0_5 = arith.constant 0 : index
    %c4 = arith.constant 4 : index
    %c0_6 = arith.constant 0 : index
    %5 = vector.load %arg1[%c0_5, %c4, %c0_6] : memref<1x8x256xf32, #tpu.memory_space<vmem>>, vector<1x1x256xf32>
    %6 = vector.shape_cast %5 : vector<1x1x256xf32> to vector<1x256xf32>
    %c0_7 = arith.constant 0 : index
    %c1 = arith.constant 1 : index
    %c0_8 = arith.constant 0 : index
    %7 = vector.load %arg2[%c0_7, %c1, %c0_8] : memref<1x8x256xf32, #tpu.memory_space<vmem>>, vector<1x1x256xf32>
    %8 = vector.shape_cast %7 : vector<1x1x256xf32> to vector<1x256xf32>
    %9 = vector.shape_cast %6 : vector<1x256xf32> to vector<1x1x256xf32>
    tpu.vector_store %arg2[%c0_7, %c1, %c0_8], %9 {strides = array<i32>} : memref<1x8x256xf32, #tpu.memory_space<vmem>>, vector<1x1x256xf32>,
    %c0_9 = arith.constant 0 : index
    %c1_10 = arith.constant 1 : index
    %c0_11 = arith.constant 0 : index
    %10 = vector.load %arg1[%c0_9, %c1_10, %c0_11] : memref<1x8x256xf32, #tpu.memory_space<vmem>>, vector<1x1x256xf32>
    %11 = vector.shape_cast %10 : vector<1x1x256xf32> to vector<1x256xf32>
    %c0_12 = arith.constant 0 : index
    %c2 = arith.constant 2 : index
    %c0_13 = arith.constant 0 : index
    %12 = vector.load %arg2[%c0_12, %c2, %c0_13] : memref<1x8x256xf32, #tpu.memory_space<vmem>>, vector<1x1x256xf32>
    %13 = vector.shape_cast %12 : vector<1x1x256xf32> to vector<1x256xf32>
    %14 = vector.shape_cast %11 : vector<1x256xf32> to vector<1x1x256xf32>
    tpu.vector_store %arg2[%c0_12, %c2, %c0_13], %14 {strides = array<i32>} : memref<1x8x256xf32, #tpu.memory_space<vmem>>, vector<1x1x256xf32>,
    %c0_14 = arith.constant 0 : index
    %c5 = arith.constant 5 : index
    %c0_15 = arith.constant 0 : index
    %15 = vector.load %arg1[%c0_14, %c5, %c0_15] : memref<1x8x256xf32, #tpu.memory_space<vmem>>, vector<1x1x256xf32>
    %16 = vector.shape_cast %15 : vector<1x1x256xf32> to vector<1x256xf32>
    %c0_16 = arith.constant 0 : index
    %c3 = arith.constant 3 : index
    %c0_17 = arith.constant 0 : index
    %17 = vector.load %arg2[%c0_16, %c3, %c0_17] : memref<1x8x256xf32, #tpu.memory_space<vmem>>, vector<1x1x256xf32>
    %18 = vector.shape_cast %17 : vector<1x1x256xf32> to vector<1x256xf32>
    %19 = vector.shape_cast %16 : vector<1x256xf32> to vector<1x1x256xf32>
    tpu.vector_store %arg2[%c0_16, %c3, %c0_17], %19 {strides = array<i32>} : memref<1x8x256xf32, #tpu.memory_space<vmem>>, vector<1x1x256xf32>,
    %c0_18 = arith.constant 0 : index
    %c2_19 = arith.constant 2 : index
    %c0_20 = arith.constant 0 : index
    %20 = vector.load %arg1[%c0_18, %c2_19, %c0_20] : memref<1x8x256xf32, #tpu.memory_space<vmem>>, vector<1x1x256xf32>
    %21 = vector.shape_cast %20 : vector<1x1x256xf32> to vector<1x256xf32>
    %c0_21 = arith.constant 0 : index
    %c4_22 = arith.constant 4 : index
    %c0_23 = arith.constant 0 : index
    %22 = vector.load %arg2[%c0_21, %c4_22, %c0_23] : memref<1x8x256xf32, #tpu.memory_space<vmem>>, vector<1x1x256xf32>
    %23 = vector.shape_cast %22 : vector<1x1x256xf32> to vector<1x256xf32>
    %24 = vector.shape_cast %21 : vector<1x256xf32> to vector<1x1x256xf32>
    tpu.vector_store %arg2[%c0_21, %c4_22, %c0_23], %24 {strides = array<i32>} : memref<1x8x256xf32, #tpu.memory_space<vmem>>, vector<1x1x256xf32>,
    %c0_24 = arith.constant 0 : index
    %c6 = arith.constant 6 : index
    %c0_25 = arith.constant 0 : index
    %25 = vector.load %arg1[%c0_24, %c6, %c0_25] : memref<1x8x256xf32, #tpu.memory_space<vmem>>, vector<1x1x256xf32>
    %26 = vector.shape_cast %25 : vector<1x1x256xf32> to vector<1x256xf32>
    %c0_26 = arith.constant 0 : index
    %c5_27 = arith.constant 5 : index
    %c0_28 = arith.constant 0 : index
    %27 = vector.load %arg2[%c0_26, %c5_27, %c0_28] : memref<1x8x256xf32, #tpu.memory_space<vmem>>, vector<1x1x256xf32>
    %28 = vector.shape_cast %27 : vector<1x1x256xf32> to vector<1x256xf32>
    %29 = vector.shape_cast %26 : vector<1x256xf32> to vector<1x1x256xf32>
    tpu.vector_store %arg2[%c0_26, %c5_27, %c0_28], %29 {strides = array<i32>} : memref<1x8x256xf32, #tpu.memory_space<vmem>>, vector<1x1x256xf32>,
    %c0_29 = arith.constant 0 : index
    %c3_30 = arith.constant 3 : index
    %c0_31 = arith.constant 0 : index
    %30 = vector.load %arg1[%c0_29, %c3_30, %c0_31] : memref<1x8x256xf32, #tpu.memory_space<vmem>>, vector<1x1x256xf32>
    %31 = vector.shape_cast %30 : vector<1x1x256xf32> to vector<1x256xf32>
    %c0_32 = arith.constant 0 : index
    %c6_33 = arith.constant 6 : index
    %c0_34 = arith.constant 0 : index
    %32 = vector.load %arg2[%c0_32, %c6_33, %c0_34] : memref<1x8x256xf32, #tpu.memory_space<vmem>>, vector<1x1x256xf32>
    %33 = vector.shape_cast %32 : vector<1x1x256xf32> to vector<1x256xf32>
    %34 = vector.shape_cast %31 : vector<1x256xf32> to vector<1x1x256xf32>
    tpu.vector_store %arg2[%c0_32, %c6_33, %c0_34], %34 {strides = array<i32>} : memref<1x8x256xf32, #tpu.memory_space<vmem>>, vector<1x1x256xf32>,
    %c0_35 = arith.constant 0 : index
    %c7 = arith.constant 7 : index
    %c0_36 = arith.constant 0 : index
    %35 = vector.load %arg1[%c0_35, %c7, %c0_36] : memref<1x8x256xf32, #tpu.memory_space<vmem>>, vector<1x1x256xf32>
    %36 = vector.shape_cast %35 : vector<1x1x256xf32> to vector<1x256xf32>
    %c0_37 = arith.constant 0 : index
    %c7_38 = arith.constant 7 : index
    %c0_39 = arith.constant 0 : index
    %37 = vector.load %arg2[%c0_37, %c7_38, %c0_39] : memref<1x8x256xf32, #tpu.memory_space<vmem>>, vector<1x1x256xf32>
    %38 = vector.shape_cast %37 : vector<1x1x256xf32> to vector<1x256xf32>
    %39 = vector.shape_cast %36 : vector<1x256xf32> to vector<1x1x256xf32>
    tpu.vector_store %arg2[%c0_37, %c7_38, %c0_39], %39 {strides = array<i32>} : memref<1x8x256xf32, #tpu.memory_space<vmem>>, vector<1x1x256xf32>,
    return
  }
  func.func @transform_0(%arg0: i32) -> (i32, i32, i32) {
    %c0_i32 = arith.constant 0 : i32
    %c0_i32_0 = arith.constant 0 : i32
    %c0_i32_1 = arith.constant 0 : i32
    return %arg0, %c0_i32, %c0_i32_0 : i32, i32, i32
  }
  func.func @transform_1(%arg0: i32) -> (i32, i32, i32) {
    %c0_i32 = arith.constant 0 : i32
    %c0_i32_0 = arith.constant 0 : i32
    %c0_i32_1 = arith.constant 0 : i32
    return %arg0, %c0_i32, %c0_i32_0 : i32, i32, i32
  }
}

</mosaic_0001>

<llo_original>
// kernel: tpu_custom_call.1
$region0: #{tpu_custom_call.1}
  #allocation0 [shape = 'u32[]', space=smem, size = 0x4, offset = 0x4, fixed_abs, tag = 'smem constant byte address 0x4 - core index']
  #allocation1 [shape = 'u32[144,128]{1,0:T(1,128)}', space=vmem, size = 0x12000, scoped, tag = 'internal scratch']
  %s0 = inlined_call_operand.hbm [shape: f32[2,8,256], index: 0, kind: input, shape index: {}]
  %s1 = inlined_call_operand.hbm [shape: f32[2,8,256], index: 1, kind: output, shape index: {}]
  %s2 = sld [smem:[#allocation0]]
  $region41: #{tpu_custom_call.1} parent=0
    _
  %s4 = ssub.s32 1, %s2
  %s5 = scalar_select 0, %s4, %s2
  $region1: #{tpu_custom_call.1} parent=0
    #allocation2 [shape = 'u8[16384]{0}', space=vmem, size = 0x4000, scoped, tag = 'input window, operand 0']
    #allocation3 [shape = 's32[2]{0}', space=sflag, size = 0x8, scoped, tag = 'scoped memory for tpu_custom_call.1']
    #allocation4 [shape = 's32[2]{0}', space=sflag, size = 0x8, scoped, tag = 'scoped memory for tpu_custom_call.1']
    #allocation5 [shape = 'u8[16384]{0}', space=vmem, size = 0x4000, scoped, tag = 'output window, operand 0']
    %6 = vsyncpa [#allocation3], 0
    %s7 = scalar_lea.sflag [#allocation3], 1
    %8 = vsyncpa %s7, 0
    %9 = vsyncpa [#allocation4], 0
    %s10 = scalar_lea.sflag [#allocation4], 1
    %11 = vsyncpa %s10, 0
    loop: start=0, step=1, limit=4
    $region2: #{tpu_custom_call.1} parent=1 // loop_pre_header
      _
    $region3: #{tpu_custom_call.1} parent=1 // loop_header
      %s13 = sphi 0, %s17
      %p14 = scmp.ge.s32.totalorder %s13, 4
      %s23 = sphi 0, %s25
      %s26 = sphi 0, %s23
      %s27 = sphi 0, %s26
      %s43 = sphi 0, %s27
      %s49 = sphi 0, %s51
      %s52 = sphi 0, %s49
      %s53 = sphi 0, %s52
      %s69 = sphi 0, %s53
    $region4: #{tpu_custom_call.1} parent=1 // loop_header_branch
      %16 = sbr.rel (%p14) target = $region8
    $region5: #{tpu_custom_call.1} parent=1 // loop_body
      %s18 = ssub.s32 %s13, 1
      %s19 = ssub.s32 %s13, 2
      %s20 = sadd.s32 %s13, 1
      %s21 = ssub.s32 %s13, %s20
      %p22 = scmp.eq.s32.totalorder %s21, 0
      %s24 = sadd.s32 %s23, 1
      %s25 = scalar_select %p22, %s23, %s24
      %p28 = pneg %p22
      %p29 = scmp.eq.s32.totalorder %s13, 1
      %p30 = por %p28, %p29
      %p31 = scmp.ne.s32.totalorder %s23, %s26
      %p32 = scmp.eq.s32.totalorder %s13, 0
      %p33 = por %p31, %p32
      %p34 = scmp.ne.s32.totalorder %s23, %s26
      %p35 = scmp.eq.s32.totalorder %s18, 1
      %p36 = por %p34, %p35
      %p37 = scmp.ne.s32.totalorder %s26, %s27
      %p38 = scmp.eq.s32.totalorder %s18, 0
      %p39 = por %p37, %p38
      %p40 = scmp.ne.s32.totalorder %s26, %s27
      %p41 = scmp.eq.s32.totalorder %s19, 1
      %p42 = por %p40, %p41
      %p44 = scmp.ne.s32.totalorder %s27, %s43
      %p45 = scmp.eq.s32.totalorder %s19, 0
      %p46 = por %p44, %p45
      %s47 = ssub.s32 %s13, %s20
      %p48 = scmp.eq.s32.totalorder %s47, 0
      %s50 = sadd.s32 %s49, 1
      %s51 = scalar_select %p48, %s49, %s50
      %p54 = pneg %p48
      %p55 = scmp.eq.s32.totalorder %s13, 1
      %p56 = por %p54, %p55
      %p57 = scmp.ne.s32.totalorder %s49, %s52
      %p58 = scmp.eq.s32.totalorder %s13, 0
      %p59 = por %p57, %p58
      %p60 = scmp.ne.s32.totalorder %s49, %s52
      %p61 = scmp.eq.s32.totalorder %s18, 1
      %p62 = por %p60, %p61
      %p63 = scmp.ne.s32.totalorder %s52, %s53
      %p64 = scmp.eq.s32.totalorder %s18, 0
      %p65 = por %p63, %p64
      %p66 = scmp.ne.s32.totalorder %s52, %s53
      %p67 = scmp.eq.s32.totalorder %s19, 1
      %p68 = por %p66, %p67
      %p70 = scmp.ne.s32.totalorder %s53, %s69
      %p71 = scmp.eq.s32.totalorder %s19, 0
      %p72 = por %p70, %p71
      %p73 = scmp.le.s32.totalorder 1, %s13
      %p74 = scmp.lt.s32.totalorder %s13, 3
      %p75 = pnand %p73, %p74
      %p76 = pneg %p75
      // Predicated region
      $region9: #{tpu_custom_call.1} parent=5 // pred_check
        _
      $region10: #{tpu_custom_call.1} parent=5 // pred_check_branch
        %78 = sbr.rel (%p75) target = $region12
      $region11: #{tpu_custom_call.1} parent=5 // pred_region
        %s79 = ssub.s32 %s13, 1
      $region12: #{tpu_custom_call.1} parent=5 // pred_fallthru
        _
      %p80 = scmp.lt.s32.totalorder %s13, 2
      // Predicated region
      $region13: #{tpu_custom_call.1} parent=5 // pred_check
        %p81 = pneg %p80
      $region14: #{tpu_custom_call.1} parent=5 // pred_check_branch
        %83 = sbr.rel (%p81) target = $region16
      $region15: #{tpu_custom_call.1} parent=5 // pred_region
        // Predicated region
        $region17: #{tpu_custom_call.1} parent=15 // pred_check
          %p84 = pneg %p33
        $region18: #{tpu_custom_call.1} parent=15 // pred_check_branch
          %86 = sbr.rel (%p84) target = $region20
        $region19: #{tpu_custom_call.1} parent=15 // pred_region
          %s87 = sand.u32 %s23, 1
          %s88 = scalar_lea.sflag [#allocation3], %s87
          %s89 = sand.u32 %s23, 1
          %s90 = smul.addr %s89, 16
          %s91 = scalar_lea.vmem [#allocation2], %s90
          %s93 = ssub.s32 256, 256
          %94 = vsyncadd %s88, %s93
          %s95 = smul.addr %s13, 2
          %s96 = smul.addr %s95, 128
          %s97 = scalar_lea.hbm %s0, %s96
          %s99 = sshll.u32 %s91, 4
          %s100 = int_to_ptr.vmem [resolvable:$true] %s99
          %102 = dma.hbm_to_vmem [thread:$0]  %s97, 256, %s100, %s88
        $region20: #{tpu_custom_call.1} parent=15 // pred_fallthru
          _
      $region16: #{tpu_custom_call.1} parent=5 // pred_fallthru
        _
      %p103 = scmp.le.s32.totalorder 1, %s13
      %p104 = scmp.lt.s32.totalorder %s13, 3
      %p105 = pnand %p103, %p104
      %p106 = pneg %p105
      // Predicated region
      $region21: #{tpu_custom_call.1} parent=5 // pred_check
        _
      $region22: #{tpu_custom_call.1} parent=5 // pred_check_branch
        %108 = sbr.rel (%p105) target = $region24
      $region23: #{tpu_custom_call.1} parent=5 // pred_region
        %s109 = ssub.s32 %s13, 1
        %s110 = sand.u32 %s26, 1
        %s111 = scalar_lea.sflag [#allocation3], %s110
        %s112 = sand.u32 %s26, 1
        %s113 = smul.addr %s112, 16
        %s114 = scalar_lea.vmem [#allocation2], %s113
        // Predicated region
        $region25: #{tpu_custom_call.1} parent=23 // pred_check
          %p115 = pneg %p39
        $region26: #{tpu_custom_call.1} parent=23 // pred_check_branch
          %117 = sbr.rel (%p115) target = $region28
        $region27: #{tpu_custom_call.1} parent=23 // pred_region
          %118 = dma.done %s111, 256
        $region28: #{tpu_custom_call.1} parent=23 // pred_fallthru
          _
        %s119 = sand.u32 %s26, 1
        %s120 = scalar_lea.sflag [#allocation3], %s119
        %s121 = sand.u32 %s26, 1
        %s122 = smul.addr %s121, 16
        %s123 = scalar_lea.vmem [#allocation2], %s122
        %p124 = pneg %p39
        %p125 = pneg %p36
        %p126 = pneg %p65
        %p127 = pneg %p62
        %s128 = sand.u32 %s52, 1
        %s129 = scalar_lea.sflag [#allocation4], %s128
        %s130 = sand.u32 %s52, 1
        %s131 = smul.addr %s130, 16
        %s132 = scalar_lea.vmem [#allocation5], %s131
        %v133 = vld [vmem:[%s114] ss:$8 sm:$0x3]
        %v134 = vlaneseq
        %vm135 = vcmp.ge.s32.totalorder %v134, 0
        %vm136 = vcmp.lt.s32.totalorder %v134, 256
        %vm137 = vmand %vm135, %vm136
        %138 = vst.msk [vmem:[%s132] ss:$8 sm:$0x3] %vm137, %v133
        %139 = vst.msk [vmem:[%s132] ss:$8 sm:$0x0] %vm137, %v133
        %s140 = scalar_lea.vmem %s114, 4 [#allocation2]
        %v141 = vld [vmem:[%s140] ss:$8 sm:$0x3]
        %s142 = scalar_lea.vmem %s132, 1 [#allocation5]
        %143 = vst.msk [vmem:[%s142] ss:$8 sm:$0x3] %vm137, %v141
        %144 = vst.msk [vmem:[%s142] ss:$8 sm:$0x0] %vm137, %v141
        %s145 = scalar_lea.vmem %s114, 1 [#allocation2]
        %v146 = vld [vmem:[%s145] ss:$8 sm:$0x3]
        %s147 = scalar_lea.vmem %s132, 2 [#allocation5]
        %148 = vst.msk [vmem:[%s147] ss:$8 sm:$0x3] %vm137, %v146
        %149 = vst.msk [vmem:[%s147] ss:$8 sm:$0x0] %vm137, %v146
        %s150 = scalar_lea.vmem %s114, 5 [#allocation2]
        %v151 = vld [vmem:[%s150] ss:$8 sm:$0x3]
        %s152 = scalar_lea.vmem %s132, 3 [#allocation5]
        %153 = vst.msk [vmem:[%s152] ss:$8 sm:$0x3] %vm137, %v151
        %154 = vst.msk [vmem:[%s152] ss:$8 sm:$0x0] %vm137, %v151
        %s155 = scalar_lea.vmem %s114, 2 [#allocation2]
        %v156 = vld [vmem:[%s155] ss:$8 sm:$0x3]
        %s157 = scalar_lea.vmem %s132, 4 [#allocation5]
        %158 = vst.msk [vmem:[%s157] ss:$8 sm:$0x3] %vm137, %v156
        %159 = vst.msk [vmem:[%s157] ss:$8 sm:$0x0] %vm137, %v156
        %s160 = scalar_lea.vmem %s114, 6 [#allocation2]
        %v161 = vld [vmem:[%s160] ss:$8 sm:$0x3]
        %s162 = scalar_lea.vmem %s132, 5 [#allocation5]
        %163 = vst.msk [vmem:[%s162] ss:$8 sm:$0x3] %vm137, %v161
        %164 = vst.msk [vmem:[%s162] ss:$8 sm:$0x0] %vm137, %v161
        %s165 = scalar_lea.vmem %s114, 3 [#allocation2]
        %v166 = vld [vmem:[%s165] ss:$8 sm:$0x3]
        %s167 = scalar_lea.vmem %s132, 6 [#allocation5]
        %168 = vst.msk [vmem:[%s167] ss:$8 sm:$0x3] %vm137, %v166
        %169 = vst.msk [vmem:[%s167] ss:$8 sm:$0x0] %vm137, %v166
        %s170 = scalar_lea.vmem %s114, 7 [#allocation2]
        %v171 = vld [vmem:[%s170] ss:$8 sm:$0x3]
        %s172 = scalar_lea.vmem %s132, 7 [#allocation5]
        %173 = vst.msk [vmem:[%s172] ss:$8 sm:$0x3] %vm137, %v171
        %174 = vst.msk [vmem:[%s172] ss:$8 sm:$0x0] %vm137, %v171
        %s175 = sand.u32 %s52, 1
        %s176 = scalar_lea.sflag [#allocation4], %s175
        %s177 = sand.u32 %s52, 1
        %s178 = smul.addr %s177, 16
        %s179 = scalar_lea.vmem [#allocation5], %s178
        // Predicated region
        $region29: #{tpu_custom_call.1} parent=23 // pred_check
          %p180 = pneg %p62
        $region30: #{tpu_custom_call.1} parent=23 // pred_check_branch
          %182 = sbr.rel (%p180) target = $region32
        $region31: #{tpu_custom_call.1} parent=23 // pred_region
          %s184 = ssub.s32 256, 256
          %185 = vsyncadd %s176, %s184
          %s186 = smul.addr %s18, 2
          %s187 = smul.addr %s186, 128
          %s188 = scalar_lea.hbm %s1, %s187
          %s190 = sshll.u32 %s179, 4
          %s191 = int_to_ptr.vmem [resolvable:$true] %s190
          %193 = dma.vmem_to_hbm [thread:$0]  %s191, 256, %s188, %s176
        $region32: #{tpu_custom_call.1} parent=23 // pred_fallthru
          _
      $region24: #{tpu_custom_call.1} parent=5 // pred_fallthru
        _
      %p194 = scmp.le.s32.totalorder 2, %s13
      // Predicated region
      $region33: #{tpu_custom_call.1} parent=5 // pred_check
        %p195 = pneg %p194
      $region34: #{tpu_custom_call.1} parent=5 // pred_check_branch
        %197 = sbr.rel (%p195) target = $region36
      $region35: #{tpu_custom_call.1} parent=5 // pred_region
        %s198 = ssub.s32 %s13, 2
        // Predicated region
        $region37: #{tpu_custom_call.1} parent=35 // pred_check
          %p199 = pneg %p68
        $region38: #{tpu_custom_call.1} parent=35 // pred_check_branch
          %201 = sbr.rel (%p199) target = $region40
        $region39: #{tpu_custom_call.1} parent=35 // pred_region
          %s202 = sand.u32 %s53, 1
          %s203 = scalar_lea.sflag [#allocation4], %s202
          %s204 = sand.u32 %s53, 1
          %s205 = smul.addr %s204, 16
          %s206 = scalar_lea.vmem [#allocation5], %s205
          %207 = dma.done %s203, 256
        $region40: #{tpu_custom_call.1} parent=35 // pred_fallthru
          _
      $region36: #{tpu_custom_call.1} parent=5 // pred_fallthru
        _
    $region6: #{tpu_custom_call.1} parent=1 // loop_footer
      %s17 = sadd.s32 1, %s13
    $region7: #{tpu_custom_call.1} parent=1 // loop_footer_branch
      %12 = sbr.rel target = $region3
    $region8: #{tpu_custom_call.1} parent=1 // loop_exit
      _
    %208 = vsyncpa [#allocation3], 1
    %s209 = scalar_lea.sflag [#allocation3], 1
    %210 = vsyncpa %s209, 1
    %211 = vsyncpa [#allocation4], 1
    %s212 = scalar_lea.sflag [#allocation4], 1
    %213 = vsyncpa %s212, 1

</llo_original>
